<compile_context>
chip_gen: v5e
topology: v5e:2x2
jax: 0.10.0
libtpu: 0.0.40
codegen_flags: <defaults>
</compile_context>

<pallas_src>
import functools

import jax
import jax.numpy as jnp
from jax import lax
from jax.experimental import pallas as pl
from jax.experimental.pallas import tpu as pltpu


def _round_up(x: int, m: int) -> int:
    return ((x + m - 1) // m) * m


def _vmem_capacity_bytes() -> int:
    """Physical VMEM of the attached TPU; falls back to the smallest (v7x)."""
    try:
        return int(pltpu.get_tpu_info().vmem_capacity_bytes)
    except Exception:
        return 64 * 1024 * 1024


def _choose_tiling(n_rows: int, n_lane: int):
    """Pick (tile_m, vmem_limit_bytes) per TPU generation.

    128-MiB-VMEM parts (v5e/v6e): ~4 MiB per-ref blocks, generous scoped VMEM.
    64-MiB-VMEM parts (v7x): ~2 MiB per-ref blocks, capped scoped VMEM, and
    >= 2 grid steps so ("parallel",) can use both TensorCores.
    """
    if _vmem_capacity_bytes() >= 96 * 1024 * 1024:
        target_block_bytes = 4 * 1024 * 1024
        vmem_limit = 80 * 1024 * 1024
    else:
        target_block_bytes = 2 * 1024 * 1024
        vmem_limit = 40 * 1024 * 1024

    if n_rows <= 8:
        # Tiny input: single full-height block (row dim == full array dim).
        return n_rows, vmem_limit

    tile_m = max(8, (target_block_bytes // (n_lane * 4)) // 8 * 8)
    tile_m = min(tile_m, _round_up(n_rows, 8))
    if pl.cdiv(n_rows, tile_m) < 2:
        # Keep both v7x TensorCores busy (no effect on single-TC v5e/v6e).
        tile_m = max(8, _round_up(pl.cdiv(n_rows, 2), 8))
    return tile_m, vmem_limit


def _complex_dropout_kernel(seed_ref, xr_ref, xi_ref, or_ref, oi_ref, *,
                            threshold, scale, tile_m, n_lane):
    # One Bernoulli(keep_prob) mask per complex element, shared by the real
    # and imag planes.  Randomness is a counter-based hash over the global
    # flat element index mixed with the runtime seed.
    # NOTE: indices are built in int32, so planes with >= 2^31 f32 elements
    # would wrap; irrelevant at realistic sizes.
    lg = n_lane.bit_length() - 1                       # n_lane is a power of 2
    row = lax.broadcasted_iota(jnp.int32, (tile_m, n_lane), 0)
    col = lax.broadcasted_iota(jnp.int32, (tile_m, n_lane), 1)
    base = pl.program_id(0) * (tile_m * n_lane)        # scalar-unit work
    gid = (base + ((row << lg) | col)).astype(jnp.uint32)

    # Seed mixing stays scalar-side (single broadcast into the vector XOR).
    seed_mix = seed_ref[0].astype(jnp.uint32) * jnp.uint32(0x9E3779B1)

    # 2-mul multiply/xorshift mixer (cut-down fmix32) — plenty for dropout.
    h = gid ^ seed_mix
    h = h * jnp.uint32(0x85EBCA6B)
    h = h ^ (h >> 16)
    h = h * jnp.uint32(0xC2B2AE35)
    h = h ^ (h >> 15)

    # Bernoulli(keep_prob) via integer threshold, inverted-dropout scaling.
    mask = jnp.where(h < jnp.uint32(threshold),
                     jnp.float32(scale), jnp.float32(0.0))

    or_ref[...] = xr_ref[...] * mask
    oi_ref[...] = xi_ref[...] * mask


def complex_dropout(x, p: float, seed: int, training: bool = True):
    """Pallas TPU implementation of ComplexDropout.forward.

    x: complex64 array of any shape (NCHW in the tests).
    """
    if (not training) or p == 0.0:
        return x
    if p >= 1.0:
        # keep_prob == 0: everything is dropped (avoid 1/0 at trace time).
        return jnp.zeros_like(x)

    keep_prob = 1.0 - p
    scale = 1.0 / keep_prob
    threshold = min(int(round(keep_prob * (2 ** 32))), 2 ** 32 - 1)

    orig_shape = x.shape
    # TODO(synk): complex64 cannot live in VMEM and lax.bitcast_convert_type
    # rejects complex<->float bit-views, so the split/recombine stays in the
    # wrapper as fused XLA ops.
    xr = jnp.real(x).astype(jnp.float32).reshape(-1)
    xi = jnp.imag(x).astype(jnp.float32).reshape(-1)
    total = xr.size

    # Lane-dense 2D layout.  Prefer a lane count that divides `total` so there
    # is no pad copy and no post-kernel slice copy (the common case).
    n_lane = next((l for l in (1024, 512, 256, 128) if total % l == 0), 128)
    pad = (-total) % n_lane
    if pad:  # rare fallback: minimal pad to a 128-lane multiple
        xr = jnp.pad(xr, (0, pad))
        xi = jnp.pad(xi, (0, pad))
    n_rows = (total + pad) // n_lane
    xr2 = xr.reshape(n_rows, n_lane)
    xi2 = xi.reshape(n_rows, n_lane)

    tile_m, vmem_limit = _choose_tiling(n_rows, n_lane)
    grid = pl.cdiv(n_rows, tile_m)   # ragged last block masked by Pallas
    seed_arr = jnp.asarray([seed], dtype=jnp.int32)

    kernel = functools.partial(
        _complex_dropout_kernel,
        threshold=threshold, scale=scale, tile_m=tile_m, n_lane=n_lane)

    blk = lambda i, seed_ref: (i, 0)
    out_r, out_i = pl.pallas_call(
        kernel,
        out_shape=(
            jax.ShapeDtypeStruct((n_rows, n_lane), jnp.float32),
            jax.ShapeDtypeStruct((n_rows, n_lane), jnp.float32),
        ),
        grid_spec=pltpu.PrefetchScalarGridSpec(
            num_scalar_prefetch=1,
            grid=(grid,),
            in_specs=[
                pl.BlockSpec((tile_m, n_lane), blk),
                pl.BlockSpec((tile_m, n_lane), blk),
            ],
            out_specs=[
                pl.BlockSpec((tile_m, n_lane), blk),
                pl.BlockSpec((tile_m, n_lane), blk),
            ],
        ),
        compiler_params=pltpu.CompilerParams(
            dimension_semantics=("parallel",),
            vmem_limit_bytes=vmem_limit,
        ),
    )(seed_arr, xr2, xi2)

    out_r = out_r.reshape(-1)
    out_i = out_i.reshape(-1)
    if pad:
        out_r = out_r[:total]
        out_i = out_i[:total]
    return jax.lax.complex(out_r, out_i).reshape(orig_shape)


if __name__ == "__main__":
    key = jax.random.PRNGKey(0)
    kr, ki = jax.random.split(key)

    B, C, H, W = 2, 4, 16, 16
    x_real = jax.random.normal(kr, (B, C, H, W), dtype=jnp.float32)
    x_imag = jax.random.normal(ki, (B, C, H, W), dtype=jnp.float32)
    x = jax.lax.complex(x_real, x_imag)  # complex64, NCHW

    p = 0.5
    y = jax.block_until_ready(complex_dropout(x, p=p, seed=42, training=True))

    assert y.shape == x.shape and y.dtype == x.dtype
    scale = 1.0 / (1.0 - p)
    yr, yi = jnp.real(y), jnp.imag(y)
    xr, xi = jnp.real(x), jnp.imag(x)

    dropped = yr == 0.0
    kept = ~dropped
    # kept elements are scaled by exactly 1/(1-p)
    assert bool(jnp.all(jnp.where(
        kept, jnp.abs(yr - xr * scale) < 1e-5 * (1.0 + jnp.abs(xr)), True)))
    assert bool(jnp.all(jnp.where(
        kept, jnp.abs(yi - xi * scale) < 1e-5 * (1.0 + jnp.abs(xi)), True)))
    # shared mask: dropped real implies dropped imag
    strictly_dropped = dropped & (jnp.abs(xr) > 1e-6)
    assert bool(jnp.all(jnp.where(strictly_dropped, yi == 0.0, True)))
    # drop fraction roughly p
    frac = float(jnp.mean(dropped.astype(jnp.float32)))
    assert 0.3 < frac < 0.7, frac

    # eval mode / p==0 passthrough
    y_eval = complex_dropout(x, p=p, seed=42, training=False)
    assert bool(jnp.all(y_eval == x))
    # p==1 -> all zeros
    y_zero = jax.block_until_ready(complex_dropout(x, p=1.0, seed=7, training=True))
    assert bool(jnp.all(y_zero == 0))

    print("KERNEL_OK")
</pallas_src>

<mosaic_0001>
module attributes {stable_mosaic.version = 11 : i64} {
  func.func @_complex_dropout_kernel(%arg0: i32, %arg1: memref<1xi32, #tpu.memory_space<smem>>, %arg2: memref<2x1024xf32, #tpu.memory_space<vmem>>, %arg3: memref<2x1024xf32, #tpu.memory_space<vmem>>, %arg4: memref<2x1024xf32, #tpu.memory_space<vmem>>, %arg5: memref<2x1024xf32, #tpu.memory_space<vmem>>) attributes {dimension_semantics = [#tpu.dimension_semantics<parallel>], iteration_bounds = array<i64: 1>, scalar_prefetch = 1 : i64, scratch_operands = 0 : i64, tpu.core_type = #tpu.core_type<tc>, window_params = [{transform_indices = @transform_0, window_bounds = array<i64: 2, 1024>}, {transform_indices = @transform_1, window_bounds = array<i64: 2, 1024>}, {transform_indices = @transform_2, window_bounds = array<i64: 2, 1024>}, {transform_indices = @transform_3, window_bounds = array<i64: 2, 1024>}]} {
    %0 = tpu.iota {dimensions = array<i32: 0>} : vector<2x1024xi32>
    %1 = tpu.iota {dimensions = array<i32: 1>} : vector<2x1024xi32>
    %c2048_i32 = arith.constant 2048 : i32
    %2 = arith.muli %arg0, %c2048_i32 : i32
    %c10_i32 = arith.constant 10 : i32
    %3 = vector.broadcast %c10_i32 : i32 to vector<2x1024xi32>
    %4 = arith.shli %0, %3 : vector<2x1024xi32>
    %5 = arith.ori %4, %1 : vector<2x1024xi32>
    %6 = vector.broadcast %2 : i32 to vector<2x1024xi32>
    %7 = arith.addi %6, %5 : vector<2x1024xi32>
    %c0 = arith.constant 0 : index
    %8 = memref.load %arg1[%c0] : memref<1xi32, #tpu.memory_space<smem>>
    %c-1640531535_i32 = arith.constant -1640531535 : i32
    %9 = arith.muli %8, %c-1640531535_i32 : i32
    %10 = vector.broadcast %9 : i32 to vector<2x1024xi32>
    %11 = arith.xori %7, %10 : vector<2x1024xi32>
    %c-2048144789_i32 = arith.constant -2048144789 : i32
    %12 = vector.broadcast %c-2048144789_i32 : i32 to vector<2x1024xi32>
    %13 = arith.muli %11, %12 : vector<2x1024xi32>
    %c16_i32 = arith.constant 16 : i32
    %14 = vector.broadcast %c16_i32 : i32 to vector<2x1024xi32>
    %15 = arith.shrui %13, %14 : vector<2x1024xi32>
    %16 = arith.xori %13, %15 : vector<2x1024xi32>
    %c-1028477387_i32 = arith.constant -1028477387 : i32
    %17 = vector.broadcast %c-1028477387_i32 : i32 to vector<2x1024xi32>
    %18 = arith.muli %16, %17 : vector<2x1024xi32>
    %c15_i32 = arith.constant 15 : i32
    %19 = vector.broadcast %c15_i32 : i32 to vector<2x1024xi32>
    %20 = arith.shrui %18, %19 : vector<2x1024xi32>
    %21 = arith.xori %18, %20 : vector<2x1024xi32>
    %c-2147483648_i32 = arith.constant -2147483648 : i32
    %22 = vector.broadcast %c-2147483648_i32 : i32 to vector<2x1024xi32>
    %23 = arith.cmpi ult, %21, %22 : vector<2x1024xi32>
    %cst = arith.constant 2.000000e+00 : f32
    %cst_0 = arith.constant 0.000000e+00 : f32
    %24 = vector.broadcast %cst : f32 to vector<2x1024xf32>
    %25 = vector.broadcast %cst_0 : f32 to vector<2x1024xf32>
    %26 = arith.select %23, %24, %25 : vector<2x1024xi1>, vector<2x1024xf32>
    %c0_1 = arith.constant 0 : index
    %c0_2 = arith.constant 0 : index
    %27 = vector.load %arg2[%c0_1, %c0_2] : memref<2x1024xf32, #tpu.memory_space<vmem>>, vector<2x1024xf32>
    %28 = arith.mulf %27, %26 : vector<2x1024xf32>
    %c0_3 = arith.constant 0 : index
    %c0_4 = arith.constant 0 : index
    %29 = vector.load %arg4[%c0_3, %c0_4] : memref<2x1024xf32, #tpu.memory_space<vmem>>, vector<2x1024xf32>
    tpu.vector_store %arg4[%c0_3, %c0_4], %28 {strides = array<i32>} : memref<2x1024xf32, #tpu.memory_space<vmem>>, vector<2x1024xf32>,
    %c0_5 = arith.constant 0 : index
    %c0_6 = arith.constant 0 : index
    %30 = vector.load %arg3[%c0_5, %c0_6] : memref<2x1024xf32, #tpu.memory_space<vmem>>, vector<2x1024xf32>
    %31 = arith.mulf %30, %26 : vector<2x1024xf32>
    %c0_7 = arith.constant 0 : index
    %c0_8 = arith.constant 0 : index
    %32 = vector.load %arg5[%c0_7, %c0_8] : memref<2x1024xf32, #tpu.memory_space<vmem>>, vector<2x1024xf32>
    tpu.vector_store %arg5[%c0_7, %c0_8], %31 {strides = array<i32>} : memref<2x1024xf32, #tpu.memory_space<vmem>>, vector<2x1024xf32>,
    return
  }
  func.func @transform_0(%arg0: i32, %arg1: memref<1xi32, #tpu.memory_space<smem>>) -> (i32, i32) {
    %c0_i32 = arith.constant 0 : i32
    %c0_i32_0 = arith.constant 0 : i32
    return %arg0, %c0_i32 : i32, i32
  }
  func.func @transform_1(%arg0: i32, %arg1: memref<1xi32, #tpu.memory_space<smem>>) -> (i32, i32) {
    %c0_i32 = arith.constant 0 : i32
    %c0_i32_0 = arith.constant 0 : i32
    return %arg0, %c0_i32 : i32, i32
  }
  func.func @transform_2(%arg0: i32, %arg1: memref<1xi32, #tpu.memory_space<smem>>) -> (i32, i32) {
    %c0_i32 = arith.constant 0 : i32
    %c0_i32_0 = arith.constant 0 : i32
    return %arg0, %c0_i32 : i32, i32
  }
  func.func @transform_3(%arg0: i32, %arg1: memref<1xi32, #tpu.memory_space<smem>>) -> (i32, i32) {
    %c0_i32 = arith.constant 0 : i32
    %c0_i32_0 = arith.constant 0 : i32
    return %arg0, %c0_i32 : i32, i32
  }
}

</mosaic_0001>

<llo_original>
// kernel: tpu_custom_call.1
$region0: #{tpu_custom_call.1}
  #allocation0 [shape = 'u32[]', space=smem, size = 0x4, offset = 0x4, fixed_abs, tag = 'smem constant byte address 0x4 - core index']
  #allocation1 [shape = 'u32[72,128]{1,0:T(1,128)}', space=vmem, size = 0x9000, scoped, tag = 'internal scratch']
  #allocation2 [shape = 's32[1]{0}', space=sflag, size = 0x4, scoped, tag = 'scoped memory for tpu_custom_call.1']
  #allocation3 [shape = 's32[1]{0:T(128)S(6)}', space=smem, size = 0x200, scoped, tag = 'prefetched SMEM operand 0']
  %s0 = inlined_call_operand.<no memory space> [shape: s32[1], index: 0, kind: input, shape index: {}]
  %s1 = inlined_call_operand.hbm [shape: f32[2,1024], index: 1, kind: input, shape index: {}]
  %s2 = inlined_call_operand.hbm [shape: f32[2,1024], index: 2, kind: input, shape index: {}]
  %s3 = inlined_call_operand.hbm [shape: f32[2,1024], index: 3, kind: output, shape index: {0}]
  %s4 = inlined_call_operand.hbm [shape: f32[2,1024], index: 4, kind: output, shape index: {1}]
  %5 = xla_tuple %s3, %s4
  %s6 = sld [smem:[#allocation0]]
  $region34: #{tpu_custom_call.1} parent=0
    _
  %s8 = ssub.s32 1, %s6
  %s9 = scalar_select 0, %s8, %s6
  %10 = sst [smem:[#allocation3]] %s0
  $region1: #{tpu_custom_call.1} parent=0
    #allocation4 [shape = 'u8[8192]{0}', space=vmem, size = 0x2000, scoped, tag = 'input window, operand 1, single buffered']
    #allocation5 [shape = 's32[1]{0}', space=sflag, size = 0x4, scoped, tag = 'scoped memory for tpu_custom_call.1']
    #allocation6 [shape = 's32[1]{0}', space=sflag, size = 0x4, scoped, tag = 'scoped memory for tpu_custom_call.1']
    #allocation7 [shape = 'u8[8192]{0}', space=vmem, size = 0x2000, scoped, tag = 'input window, operand 2, single buffered']
    #allocation8 [shape = 's32[1]{0}', space=sflag, size = 0x4, scoped, tag = 'scoped memory for tpu_custom_call.1']
    #allocation9 [shape = 'u8[8192]{0}', space=vmem, size = 0x2000, scoped, tag = 'output window, operand 0, single buffered']
    #allocation10 [shape = 'u8[8192]{0}', space=vmem, size = 0x2000, scoped, tag = 'output window, operand 1, single buffered']
    #allocation11 [shape = 's32[1]{0}', space=sflag, size = 0x4, scoped, tag = 'scoped memory for tpu_custom_call.1']
    %11 = vsyncpa [#allocation5], 0
    %12 = vsyncpa [#allocation8], 0
    %13 = vsyncpa [#allocation6], 0
    %14 = vsyncpa [#allocation11], 0
    // Predicated region
    $region2: #{tpu_custom_call.1} parent=1 // pred_check
      _
    $region3: #{tpu_custom_call.1} parent=1 // pred_check_branch
      %16 = sbr.rel (0) target = $region5
    $region4: #{tpu_custom_call.1} parent=1 // pred_region
      %18 = vsyncadd [#allocation5], 0
      %s20 = sshll.u32 %s1, 4
      %s21 = int_to_ptr.hbm [resolvable:$true] %s20
      %s22 = sshll.u32 [#allocation4], 4
      %s23 = int_to_ptr.vmem [resolvable:$true] %s22
      %25 = dma.hbm_to_vmem [thread:$0]  %s21, 256, %s23, [#allocation5]
    $region5: #{tpu_custom_call.1} parent=1 // pred_fallthru
      _
    // Predicated region
    $region6: #{tpu_custom_call.1} parent=1 // pred_check
      _
    $region7: #{tpu_custom_call.1} parent=1 // pred_check_branch
      %27 = sbr.rel (0) target = $region9
    $region8: #{tpu_custom_call.1} parent=1 // pred_region
      %29 = vsyncadd [#allocation8], 0
      %s31 = sshll.u32 %s2, 4
      %s32 = int_to_ptr.hbm [resolvable:$true] %s31
      %s33 = sshll.u32 [#allocation7], 4
      %s34 = int_to_ptr.vmem [resolvable:$true] %s33
      %36 = dma.hbm_to_vmem [thread:$0]  %s32, 256, %s34, [#allocation8]
    $region9: #{tpu_custom_call.1} parent=1 // pred_fallthru
      _
    // Predicated region
    $region10: #{tpu_custom_call.1} parent=1 // pred_check
      _
    $region11: #{tpu_custom_call.1} parent=1 // pred_check_branch
      %38 = sbr.rel (0) target = $region13
    $region12: #{tpu_custom_call.1} parent=1 // pred_region
      %40 = dma.done [#allocation5], 256
    $region13: #{tpu_custom_call.1} parent=1 // pred_fallthru
      _
    // Predicated region
    $region14: #{tpu_custom_call.1} parent=1 // pred_check
      _
    $region15: #{tpu_custom_call.1} parent=1 // pred_check_branch
      %42 = sbr.rel (0) target = $region17
    $region16: #{tpu_custom_call.1} parent=1 // pred_region
      %44 = dma.done [#allocation8], 256
    $region17: #{tpu_custom_call.1} parent=1 // pred_fallthru
      _
    %v45 = vlaneseq
    %v46 = vshrl.u32 %v45, 7
    %v47 = vlaneseq
    %v48 = vand.u32 %v47, 127
    %v49 = vadd.s32 %v48, 128
    %v50 = vadd.s32 %v48, 256
    %v51 = vadd.s32 %v48, 384
    %v52 = vadd.s32 %v48, 512
    %v53 = vadd.s32 %v48, 640
    %v54 = vadd.s32 %v48, 768
    %v55 = vadd.s32 %v48, 896
    %s56 = smul.u32 0, 2048
    %v57 = vshll.u32 %v46, 10
    %v58 = vor.u32 %v57, %v48
    %v59 = vor.u32 %v57, %v49
    %v60 = vor.u32 %v57, %v50
    %v61 = vor.u32 %v57, %v51
    %v62 = vor.u32 %v57, %v52
    %v63 = vor.u32 %v57, %v53
    %v64 = vor.u32 %v57, %v54
    %v65 = vor.u32 %v57, %v55
    %v66 = vstv %s56
    %v67 = vadd.s32 %v66, %v58
    %v68 = vadd.s32 %v66, %v59
    %v69 = vadd.s32 %v66, %v60
    %v70 = vadd.s32 %v66, %v61
    %v71 = vadd.s32 %v66, %v62
    %v72 = vadd.s32 %v66, %v63
    %v73 = vadd.s32 %v66, %v64
    %v74 = vadd.s32 %v66, %v65
    %s75 = sld [smem:[#allocation3]]
    %s76 = smul.u32 %s75, 2654435761
    %v77 = vstv %s76
    %v78 = vxor.u32 %v67, %v77
    %v79 = vxor.u32 %v68, %v77
    %v80 = vxor.u32 %v69, %v77
    %v81 = vxor.u32 %v70, %v77
    %v82 = vxor.u32 %v71, %v77
    %v83 = vxor.u32 %v72, %v77
    %v84 = vxor.u32 %v73, %v77
    %v85 = vxor.u32 %v74, %v77
    %v86 = vmul.u32 %v78, 2246822507
    %v87 = vmul.u32 %v79, 2246822507
    %v88 = vmul.u32 %v80, 2246822507
    %v89 = vmul.u32 %v81, 2246822507
    %v90 = vmul.u32 %v82, 2246822507
    %v91 = vmul.u32 %v83, 2246822507
    %v92 = vmul.u32 %v84, 2246822507
    %v93 = vmul.u32 %v85, 2246822507
    %v94 = vshrl.u32 %v86, 16
    %v95 = vshrl.u32 %v87, 16
    %v96 = vshrl.u32 %v88, 16
    %v97 = vshrl.u32 %v89, 16
    %v98 = vshrl.u32 %v90, 16
    %v99 = vshrl.u32 %v91, 16
    %v100 = vshrl.u32 %v92, 16
    %v101 = vshrl.u32 %v93, 16
    %v102 = vxor.u32 %v86, %v94
    %v103 = vxor.u32 %v87, %v95
    %v104 = vxor.u32 %v88, %v96
    %v105 = vxor.u32 %v89, %v97
    %v106 = vxor.u32 %v90, %v98
    %v107 = vxor.u32 %v91, %v99
    %v108 = vxor.u32 %v92, %v100
    %v109 = vxor.u32 %v93, %v101
    %v110 = vmul.u32 %v102, 3266489909
    %v111 = vmul.u32 %v103, 3266489909
    %v112 = vmul.u32 %v104, 3266489909
    %v113 = vmul.u32 %v105, 3266489909
    %v114 = vmul.u32 %v106, 3266489909
    %v115 = vmul.u32 %v107, 3266489909
    %v116 = vmul.u32 %v108, 3266489909
    %v117 = vmul.u32 %v109, 3266489909
    %v118 = vshrl.u32 %v110, 15
    %v119 = vshrl.u32 %v111, 15
    %v120 = vshrl.u32 %v112, 15
    %v121 = vshrl.u32 %v113, 15
    %v122 = vshrl.u32 %v114, 15
    %v123 = vshrl.u32 %v115, 15
    %v124 = vshrl.u32 %v116, 15
    %v125 = vshrl.u32 %v117, 15
    %v126 = vxor.u32 %v110, %v118
    %v127 = vxor.u32 %v111, %v119
    %v128 = vxor.u32 %v112, %v120
    %v129 = vxor.u32 %v113, %v121
    %v130 = vxor.u32 %v114, %v122
    %v131 = vxor.u32 %v115, %v123
    %v132 = vxor.u32 %v116, %v124
    %v133 = vxor.u32 %v117, %v125
    %v134 = vadd.s32 %v126, 2147483648
    %vm136 = vcmp.lt.s32.totalorder %v134, 0
    %v137 = vadd.s32 %v127, 2147483648
    %vm139 = vcmp.lt.s32.totalorder %v137, 0
    %v140 = vadd.s32 %v128, 2147483648
    %vm142 = vcmp.lt.s32.totalorder %v140, 0
    %v143 = vadd.s32 %v129, 2147483648
    %vm145 = vcmp.lt.s32.totalorder %v143, 0
    %v146 = vadd.s32 %v130, 2147483648
    %vm148 = vcmp.lt.s32.totalorder %v146, 0
    %v149 = vadd.s32 %v131, 2147483648
    %vm151 = vcmp.lt.s32.totalorder %v149, 0
    %v152 = vadd.s32 %v132, 2147483648
    %vm154 = vcmp.lt.s32.totalorder %v152, 0
    %v155 = vadd.s32 %v133, 2147483648
    %vm157 = vcmp.lt.s32.totalorder %v155, 0
    %v158 = vsel %vm136, 2.0, 0.0
    %v159 = vsel %vm139, 2.0, 0.0
    %v160 = vsel %vm142, 2.0, 0.0
    %v161 = vsel %vm145, 2.0, 0.0
    %v162 = vsel %vm148, 2.0, 0.0
    %v163 = vsel %vm151, 2.0, 0.0
    %v164 = vsel %vm154, 2.0, 0.0
    %v165 = vsel %vm157, 2.0, 0.0
    %v166 = vld [vmem:[#allocation4] sm:$0xff]
    %v167 = vld [vmem:[#allocation4 + $0x8] sm:$0xff]
    %v176 = vrot.slane %v159, 6
    %v177 = vrot.slane %v160, 4
    %v178 = vrot.slane %v161, 2
    %v179 = vrot.slane %v163, 6
    %v180 = vrot.slane %v164, 4
    %v181 = vrot.slane %v165, 2
    %vm182 = vcmask 1041408
    %v183 = vsel %vm182, %v158, %v176
    %vm184 = vcmask 1045508
    %v185 = vsel %vm184, %v177, %v178
    %vm186 = vcmask 1043456
    %v187 = vsel %vm186, %v183, %v185
    %v188 = vsel %vm182, %v162, %v179
    %v189 = vsel %vm184, %v180, %v181
    %v190 = vsel %vm186, %v188, %v189
    %v193 = vmul.f32 %v166, %v187
    %v194 = vmul.f32 %v167, %v190
    %195 = vst [vmem:[#allocation9] sm:$0xff] %v193
    %196 = vst [vmem:[#allocation9 + $0x8] sm:$0xff] %v194
    %v197 = vld [vmem:[#allocation7] sm:$0xff]
    %v198 = vld [vmem:[#allocation7 + $0x8] sm:$0xff]
    %v199 = vmul.f32 %v197, %v187
    %v200 = vmul.f32 %v198, %v190
    %201 = vst [vmem:[#allocation10] sm:$0xff] %v199
    %202 = vst [vmem:[#allocation10 + $0x8] sm:$0xff] %v200
    // Predicated region
    $region18: #{tpu_custom_call.1} parent=1 // pred_check
      _
    $region19: #{tpu_custom_call.1} parent=1 // pred_check_branch
      %204 = sbr.rel (0) target = $region21
    $region20: #{tpu_custom_call.1} parent=1 // pred_region
      %206 = vsyncadd [#allocation6], 0
      %s208 = sshll.u32 [#allocation9], 4
      %s209 = int_to_ptr.vmem [resolvable:$true] %s208
      %s210 = sshll.u32 %s3, 4
      %s211 = int_to_ptr.hbm [resolvable:$true] %s210
      %213 = dma.vmem_to_hbm [thread:$0]  %s209, 256, %s211, [#allocation6]
    $region21: #{tpu_custom_call.1} parent=1 // pred_fallthru
      _
    // Predicated region
    $region22: #{tpu_custom_call.1} parent=1 // pred_check
      _
    $region23: #{tpu_custom_call.1} parent=1 // pred_check_branch
      %215 = sbr.rel (0) target = $region25
    $region24: #{tpu_custom_call.1} parent=1 // pred_region
      %217 = vsyncadd [#allocation11], 0
      %s219 = sshll.u32 [#allocation10], 4
      %s220 = int_to_ptr.vmem [resolvable:$true] %s219
      %s221 = sshll.u32 %s4, 4
      %s222 = int_to_ptr.hbm [resolvable:$true] %s221
      %224 = dma.vmem_to_hbm [thread:$0]  %s220, 256, %s222, [#allocation11]
    $region25: #{tpu_custom_call.1} parent=1 // pred_fallthru
      _
    // Predicated region
    $region26: #{tpu_custom_call.1} parent=1 // pred_check
      _
    $region27: #{tpu_custom_call.1} parent=1 // pred_check_branch
      %226 = sbr.rel (0) target = $region29
    $region28: #{tpu_custom_call.1} parent=1 // pred_region
      %228 = dma.done [#allocation6], 256
    $region29: #{tpu_custom_call.1} parent=1 // pred_fallthru
      _
    // Predicated region
    $region30: #{tpu_custom_call.1} parent=1 // pred_check
      _
    $region31: #{tpu_custom_call.1} parent=1 // pred_check_branch
      %230 = sbr.rel (0) target = $region33
    $region32: #{tpu_custom_call.1} parent=1 // pred_region
      %232 = dma.done [#allocation11], 256
    $region33: #{tpu_custom_call.1} parent=1 // pred_fallthru
      _
    %233 = vsyncpa [#allocation5], 1
    %234 = vsyncpa [#allocation8], 1
    %235 = vsyncpa [#allocation6], 1
    %236 = vsyncpa [#allocation11], 1

</llo_original>
